<compile_context>
chip_gen: v7x
topology: tpu7x:2x2x1
jax: 0.10.0
libtpu: 0.0.40
codegen_flags: <defaults>
</compile_context>

<pallas_src>
import functools

import numpy as np
import jax
import jax.numpy as jnp
from jax.experimental import pallas as pl
from jax.experimental.pallas import tpu as pltpu


def _attn_head_kernel(x_ref, w_ref, bias_ref, sel_ref, o_ref, *, head_size):
    # x_ref:    (Bblk, T, C)        one chunk of the batch
    # w_ref:    (C, T*H + 2H) bf16  fused [Wv tiled T times | Wq | Wk]
    # bias_ref: (T, T)        f32   additive causal mask (0 / -1e30)
    # sel_ref:  (T, T*H)      f32   block-diagonal selector (1.0 where j//H == t)
    # o_ref:    (Bblk, 1, T*H)      lane-dense output slab (T*H = 128 here)
    b_blk, T, C = x_ref.shape
    H = head_size
    TH = T * H

    # ---- fused projection: one MXU matmul computes V_wide, Q, K ----------
    x2 = x_ref[...].reshape(b_blk * T, C).astype(jnp.bfloat16)
    proj = jnp.dot(x2, w_ref[...], preferred_element_type=jnp.float32)  # (Bblk*T, TH+2H)

    vw = proj[:, :TH].reshape(b_blk, T, TH)              # v replicated T times along lanes
    q = proj[:, TH:TH + H].reshape(b_blk, T, H)
    k = proj[:, TH + H:TH + 2 * H].reshape(b_blk, T, H)

    # ---- scaled causal attention (f32 on the VPU/EUP) ---------------------
    # Contract the last dims of q and k directly: no materialized transpose.
    s = jnp.einsum("btd,bsd->bts", q, k,
                   preferred_element_type=jnp.float32) * (H ** -0.5)     # (Bblk, T, T)
    s = s + bias_ref[...][None, :, :]                    # additive mask, no -inf

    s = s - jnp.max(s, axis=-1, keepdims=True)
    p = jnp.exp(s)
    p = p * pl.reciprocal(jnp.sum(p, axis=-1, keepdims=True), approx=True)

    # TODO(synk): training-mode dropout on `p` omitted (eval-mode identity; dropout=0.0).

    # ---- attention @ V, produced already lane-flattened -------------------
    # ow[b, t, t'*H + h] == (p @ v)[b, t, h] for every t'; selecting the
    # block-diagonal (j // H == t) and reducing over t yields vec(out) per
    # batch as a single (1, T*H) row -> full-width, unmasked store.
    ow = jnp.einsum("bts,bsj->btj", p.astype(jnp.bfloat16), vw.astype(jnp.bfloat16),
                    preferred_element_type=jnp.float32)                 # (Bblk, T, TH)
    o_ref[...] = jnp.sum(ow * sel_ref[...][None, :, :],
                         axis=1, keepdims=True).astype(o_ref.dtype)     # (Bblk, 1, TH)


def self_attention_head(x, wq, wk, wv):
    """x: (B, T, C) f32; wq/wk/wv: (C, H). Returns (B, T, H). Matches eval-mode PyTorch."""
    B, T, C = x.shape
    H = wq.shape[1]
    TH = T * H

    # Fused projection weight, bf16 operands for the MXU (f32 accumulation in-kernel).
    # V columns are tiled T times so the PV matmul output is lane-dense.
    w_fused = jnp.concatenate([jnp.tile(wv, (1, T)), wq, wk], axis=1).astype(jnp.bfloat16)

    # Precomputed masks (analog of the module's registered `tril` buffer).
    t_idx = np.arange(T)
    j_idx = np.arange(TH)
    causal_bias = jnp.asarray(
        np.where(t_idx[None, :] <= t_idx[:, None], 0.0, -1e30).astype(np.float32))   # (T, T)
    flat_sel = jnp.asarray(
        ((j_idx[None, :] >= t_idx[:, None] * H)
         & (j_idx[None, :] < (t_idx[:, None] + 1) * H)).astype(np.float32))          # (T, TH)

    # Split B over (at most) two "parallel" grid blocks: one per v7x TensorCore;
    # on v5e/v6e this is just 2 short sequential steps instead of B.
    num_blocks = 2 if (B % 2 == 0 and B >= 2) else 1
    b_blk = B // num_blocks

    kernel = functools.partial(_attn_head_kernel, head_size=H)

    out = pl.pallas_call(
        kernel,
        out_shape=jax.ShapeDtypeStruct((B, 1, TH), x.dtype),
        grid_spec=pltpu.PrefetchScalarGridSpec(
            num_scalar_prefetch=0,
            grid=(num_blocks,),
            in_specs=[
                pl.BlockSpec((b_blk, T, C), lambda i: (i, 0, 0)),    # batch chunk
                pl.BlockSpec((C, TH + 2 * H), lambda i: (0, 0)),     # fused weights (resident)
                pl.BlockSpec((T, T), lambda i: (0, 0)),              # causal bias (resident)
                pl.BlockSpec((T, TH), lambda i: (0, 0)),             # flatten selector (resident)
            ],
            out_specs=pl.BlockSpec((b_blk, 1, TH), lambda i: (i, 0, 0)),  # lane-dense slab
        ),
        compiler_params=pltpu.CompilerParams(
            dimension_semantics=("parallel",),
        ),
    )(x, w_fused, causal_bias, flat_sel)

    return out.reshape(B, T, H)


def _reference(x, wq, wk, wv):
    """Pure-JAX f32 reference matching the PyTorch forward (eval mode)."""
    H = wq.shape[1]
    q = x @ wq
    k = x @ wk
    v = x @ wv
    s = jnp.einsum("btd,bsd->bts", q, k) * (H ** -0.5)
    T = x.shape[1]
    mask = jnp.tril(jnp.ones((T, T), dtype=bool))
    s = jnp.where(mask, s, -jnp.inf)
    p = jax.nn.softmax(s, axis=-1)
    return p @ v


if __name__ == "__main__":
    # Module config: num_embed=32, head_size=16, block_size=8, dropout=0.0
    B, T, C, H = 2, 8, 32, 16

    key = jax.random.PRNGKey(0)
    kx, kq, kk, kv = jax.random.split(key, 4)

    x = jax.random.normal(kx, (B, T, C), dtype=jnp.float32)
    scale = 1.0 / jnp.sqrt(jnp.float32(C))
    wq = jax.random.uniform(kq, (C, H), jnp.float32, -scale, scale)
    wk = jax.random.uniform(kk, (C, H), jnp.float32, -scale, scale)
    wv = jax.random.uniform(kv, (C, H), jnp.float32, -scale, scale)

    out = jax.block_until_ready(self_attention_head(x, wq, wk, wv))

    ref = _reference(x, wq, wk, wv)
    assert out.shape == (B, T, H)
    # Tolerance accommodates bf16 MXU operands + EUP approximate reciprocal;
    # accumulation and all softmax math remain f32.
    assert jnp.allclose(out, ref, atol=2e-2, rtol=2e-2), float(jnp.max(jnp.abs(out - ref)))

    print("KERNEL_OK")
</pallas_src>

<mosaic_0001>
module attributes {stable_mosaic.version = 11 : i64} {
  func.func @_attn_head_kernel(%arg0: i32, %arg1: memref<1x8x32xf32, #tpu.memory_space<vmem>>, %arg2: memref<32x160xbf16, #tpu.memory_space<vmem>>, %arg3: memref<8x8xf32, #tpu.memory_space<vmem>>, %arg4: memref<8x128xf32, #tpu.memory_space<vmem>>, %arg5: memref<1x1x128xf32, #tpu.memory_space<vmem>>) attributes {dimension_semantics = [#tpu.dimension_semantics<parallel>], iteration_bounds = array<i64: 2>, scalar_prefetch = 0 : i64, scratch_operands = 0 : i64, tpu.core_type = #tpu.core_type<tc>, window_params = [{transform_indices = @transform_0, window_bounds = array<i64: 1, 8, 32>}, {pipeline_mode = #tpu.pipeline_mode<synchronous>, transform_indices = @transform_1, window_bounds = array<i64: 32, 160>}, {pipeline_mode = #tpu.pipeline_mode<synchronous>, transform_indices = @transform_2, window_bounds = array<i64: 8, 8>}, {pipeline_mode = #tpu.pipeline_mode<synchronous>, transform_indices = @transform_3, window_bounds = array<i64: 8, 128>}, {transform_indices = @transform_4, window_bounds = array<i64: 1, 1, 128>}]} {
    %c0 = arith.constant 0 : index
    %c0_0 = arith.constant 0 : index
    %c0_1 = arith.constant 0 : index
    %0 = vector.load %arg1[%c0, %c0_0, %c0_1] : memref<1x8x32xf32, #tpu.memory_space<vmem>>, vector<1x8x32xf32>
    %1 = vector.shape_cast %0 : vector<1x8x32xf32> to vector<8x32xf32>
    %2 = arith.truncf %1 : vector<8x32xf32> to vector<8x32xbf16>
    %c0_2 = arith.constant 0 : index
    %c0_3 = arith.constant 0 : index
    %3 = vector.load %arg2[%c0_2, %c0_3] : memref<32x160xbf16, #tpu.memory_space<vmem>>, vector<32x160xbf16>
    %cst = arith.constant dense<0.000000e+00> : vector<8x160xf32>
    %4 = tpu.matmul %2, %3, %cst {dimension_numbers = #tpu.dot_dimension_numbers<[1], [0], [0], [1], [0, 0, 1, 1], [], []>} : vector<8x32xbf16>, vector<32x160xbf16>, vector<8x160xf32> -> vector<8x160xf32>
    %5 = vector.extract_strided_slice %4 {offsets = [0, 0], sizes = [8, 128], strides = [1, 1]} : vector<8x160xf32> to vector<8x128xf32>
    %6 = vector.shape_cast %5 : vector<8x128xf32> to vector<1x8x128xf32>
    %7 = vector.extract_strided_slice %4 {offsets = [0, 128], sizes = [8, 16], strides = [1, 1]} : vector<8x160xf32> to vector<8x16xf32>
    %8 = vector.shape_cast %7 : vector<8x16xf32> to vector<1x8x16xf32>
    %9 = vector.extract_strided_slice %4 {offsets = [0, 144], sizes = [8, 16], strides = [1, 1]} : vector<8x160xf32> to vector<8x16xf32>
    %10 = vector.shape_cast %9 : vector<8x16xf32> to vector<1x8x16xf32>
    "tpu.trace_start"() <{level = 10 : i32, message = "btd,bsd->bts"}> : () -> ()
    %cst_4 = arith.constant dense<0.000000e+00> : vector<1x8x8xf32>
    %11 = tpu.matmul %8, %10, %cst_4 {dimension_numbers = #tpu.dot_dimension_numbers<[2], [2], [1], [1], [0, 0, 0, 1, 1, 1], [0], [0]>} : vector<1x8x16xf32>, vector<1x8x16xf32>, vector<1x8x8xf32> -> vector<1x8x8xf32>
    "tpu.trace_stop"() : () -> ()
    %cst_5 = arith.constant 2.500000e-01 : f32
    %12 = vector.broadcast %cst_5 : f32 to vector<1x8x8xf32>
    %13 = arith.mulf %11, %12 : vector<1x8x8xf32>
    %c0_6 = arith.constant 0 : index
    %c0_7 = arith.constant 0 : index
    %14 = vector.load %arg3[%c0_6, %c0_7] : memref<8x8xf32, #tpu.memory_space<vmem>>, vector<8x8xf32>
    %15 = vector.shape_cast %14 : vector<8x8xf32> to vector<1x8x8xf32>
    %16 = arith.addf %13, %15 : vector<1x8x8xf32>
    %cst_8 = arith.constant dense<0xFF800000> : vector<1x8xf32>
    %17 = vector.multi_reduction <maximumf>, %16, %cst_8 [2] : vector<1x8x8xf32> to vector<1x8xf32>
    %18 = vector.shape_cast %17 : vector<1x8xf32> to vector<1x8x1xf32>
    %19 = vector.broadcast %18 : vector<1x8x1xf32> to vector<1x8x8xf32>
    %20 = arith.subf %16, %19 : vector<1x8x8xf32>
    %21 = math.exp %20 : vector<1x8x8xf32>
    %cst_9 = arith.constant dense<0.000000e+00> : vector<1x8xf32>
    %22 = vector.multi_reduction <add>, %21, %cst_9 [2] : vector<1x8x8xf32> to vector<1x8xf32>
    %23 = vector.shape_cast %22 : vector<1x8xf32> to vector<1x8x1xf32>
    %24 = tpu.reciprocal %23 {approx = true} : vector<1x8x1xf32> -> vector<1x8x1xf32>
    %25 = vector.broadcast %24 : vector<1x8x1xf32> to vector<1x8x8xf32>
    %26 = arith.mulf %21, %25 : vector<1x8x8xf32>
    %27 = arith.truncf %26 : vector<1x8x8xf32> to vector<1x8x8xbf16>
    %28 = arith.truncf %6 : vector<1x8x128xf32> to vector<1x8x128xbf16>
    "tpu.trace_start"() <{level = 10 : i32, message = "bts,bsj->btj"}> : () -> ()
    %cst_10 = arith.constant dense<0.000000e+00> : vector<1x8x128xf32>
    %29 = tpu.matmul %27, %28, %cst_10 {dimension_numbers = #tpu.dot_dimension_numbers<[2], [1], [1], [2], [0, 0, 0, 1, 1, 2], [0], [0]>} : vector<1x8x8xbf16>, vector<1x8x128xbf16>, vector<1x8x128xf32> -> vector<1x8x128xf32>
    "tpu.trace_stop"() : () -> ()
    %c0_11 = arith.constant 0 : index
    %c0_12 = arith.constant 0 : index
    %30 = vector.load %arg4[%c0_11, %c0_12] : memref<8x128xf32, #tpu.memory_space<vmem>>, vector<8x128xf32>
    %31 = vector.shape_cast %30 : vector<8x128xf32> to vector<1x8x128xf32>
    %32 = arith.mulf %29, %31 : vector<1x8x128xf32>
    %cst_13 = arith.constant dense<0.000000e+00> : vector<1x128xf32>
    %33 = vector.multi_reduction <add>, %32, %cst_13 [1] : vector<1x8x128xf32> to vector<1x128xf32>
    %34 = vector.shape_cast %33 : vector<1x128xf32> to vector<1x1x128xf32>
    %c0_14 = arith.constant 0 : index
    %c0_15 = arith.constant 0 : index
    %c0_16 = arith.constant 0 : index
    %35 = vector.load %arg5[%c0_14, %c0_15, %c0_16] : memref<1x1x128xf32, #tpu.memory_space<vmem>>, vector<1x1x128xf32>
    tpu.vector_store %arg5[%c0_14, %c0_15, %c0_16], %34 {strides = array<i32>} : memref<1x1x128xf32, #tpu.memory_space<vmem>>, vector<1x1x128xf32>,
    return
  }
  func.func @transform_0(%arg0: i32) -> (i32, i32, i32) {
    %c0_i32 = arith.constant 0 : i32
    %c0_i32_0 = arith.constant 0 : i32
    %c0_i32_1 = arith.constant 0 : i32
    return %arg0, %c0_i32, %c0_i32_0 : i32, i32, i32
  }
  func.func @transform_1(%arg0: i32) -> (i32, i32) {
    %c0_i32 = arith.constant 0 : i32
    %c0_i32_0 = arith.constant 0 : i32
    %c0_i32_1 = arith.constant 0 : i32
    return %c0_i32, %c0_i32_0 : i32, i32
  }
  func.func @transform_2(%arg0: i32) -> (i32, i32) {
    %c0_i32 = arith.constant 0 : i32
    %c0_i32_0 = arith.constant 0 : i32
    %c0_i32_1 = arith.constant 0 : i32
    return %c0_i32, %c0_i32_0 : i32, i32
  }
  func.func @transform_3(%arg0: i32) -> (i32, i32) {
    %c0_i32 = arith.constant 0 : i32
    %c0_i32_0 = arith.constant 0 : i32
    %c0_i32_1 = arith.constant 0 : i32
    return %c0_i32, %c0_i32_0 : i32, i32
  }
  func.func @transform_4(%arg0: i32) -> (i32, i32, i32) {
    %c0_i32 = arith.constant 0 : i32
    %c0_i32_0 = arith.constant 0 : i32
    %c0_i32_1 = arith.constant 0 : i32
    return %arg0, %c0_i32, %c0_i32_0 : i32, i32, i32
  }
}

</mosaic_0001>

<llo_original>
// kernel: tpu_custom_call.1
$region0: #{tpu_custom_call.1}
  #allocation0 [shape = 'u32[]', space=smem, size = 0x4, offset = 0x4, fixed_abs, tag = 'smem constant byte address 0x4 - core index']
  #allocation1 [shape = 'u32[144,128]{1,0:T(1,128)}', space=vmem, size = 0x12000, scoped, tag = 'internal scratch']
  %s0 = inlined_call_operand.hbm [shape: f32[2,8,32], index: 0, kind: input, shape index: {}]
  %s1 = inlined_call_operand.hbm [shape: bf16[32,160], index: 1, kind: input, shape index: {}]
  %s2 = inlined_call_operand.hbm [shape: f32[8,8], index: 2, kind: input, shape index: {}]
  %s3 = inlined_call_operand.vmem [shape: f32[8,128], index: 3, kind: input, shape index: {}]
  %s4 = inlined_call_operand.hbm [shape: f32[2,1,128], index: 4, kind: output, shape index: {}]
  %s5 = sld [smem:[#allocation0]]
  $region61: #{tpu_custom_call.1} parent=0
    _
  %s7 = ssub.s32 1, %s5
  %s8 = scalar_select 0, %s7, %s5
  $region1: #{tpu_custom_call.1} parent=0
    #allocation2 [shape = 'u8[8192]{0}', space=vmem, size = 0x2000, scoped, tag = 'input window, operand 0']
    #allocation3 [shape = 's32[2]{0}', space=sflag, size = 0x8, scoped, tag = 'scoped memory for tpu_custom_call.1']
    #allocation4 [shape = 's32[2]{0}', space=sflag, size = 0x8, scoped, tag = 'scoped memory for tpu_custom_call.1']
    #allocation5 [shape = 'u8[16384]{0}', space=vmem, size = 0x4000, scoped, tag = 'input window, operand 1, single buffered']
    #allocation6 [shape = 's32[1]{0}', space=sflag, size = 0x4, scoped, tag = 'scoped memory for tpu_custom_call.1']
    #allocation7 [shape = 'u8[4096]{0}', space=vmem, size = 0x1000, scoped, tag = 'input window, operand 2, single buffered']
    #allocation8 [shape = 'u8[1024]{0}', space=vmem, size = 0x400, scoped, tag = 'output window, operand 0']
    %9 = vsyncpa [#allocation3], 0
    %s10 = scalar_lea.sflag [#allocation3], 1
    %11 = vsyncpa %s10, 0
    %12 = vsyncpa [#allocation6], 0
    %13 = vsyncpa [#allocation4], 0
    %s14 = scalar_lea.sflag [#allocation4], 1
    %15 = vsyncpa %s14, 0
    loop: start=0, step=1, limit=4
    $region2: #{tpu_custom_call.1} parent=1 // loop_pre_header
      _
    $region3: #{tpu_custom_call.1} parent=1 // loop_header
      %s17 = sphi 0, %s21
      %p18 = scmp.ge.s32.totalorder %s17, 4
      %s27 = sphi 0, %s29
      %s30 = sphi 0, %s27
      %s31 = sphi 0, %s30
      %s47 = sphi 0, %s31
      %s51 = sphi 0, %s51
      %s53 = sphi 0, %s51
      %s54 = sphi 0, %s53
      %s68 = sphi 0, %s54
      %s72 = sphi 0, %s72
      %s74 = sphi 0, %s72
      %s75 = sphi 0, %s74
      %s89 = sphi 0, %s75
      %s93 = sphi 0, %s93
      %s95 = sphi 0, %s93
      %s96 = sphi 0, %s95
      %s110 = sphi 0, %s96
      %s116 = sphi 0, %s118
      %s119 = sphi 0, %s116
      %s120 = sphi 0, %s119
      %s136 = sphi 0, %s120
    $region4: #{tpu_custom_call.1} parent=1 // loop_header_branch
      %20 = sbr.rel (%p18) target = $region8
    $region5: #{tpu_custom_call.1} parent=1 // loop_body
      %s22 = ssub.s32 %s17, 1
      %s23 = ssub.s32 %s17, 2
      %s24 = sadd.s32 %s17, 1
      %s25 = ssub.s32 %s17, %s24
      %p26 = scmp.eq.s32.totalorder %s25, 0
      %s28 = sadd.s32 %s27, 1
      %s29 = scalar_select %p26, %s27, %s28
      %p32 = pneg %p26
      %p33 = scmp.eq.s32.totalorder %s17, 1
      %p34 = por %p32, %p33
      %p35 = scmp.ne.s32.totalorder %s27, %s30
      %p36 = scmp.eq.s32.totalorder %s17, 0
      %p37 = por %p35, %p36
      %p38 = scmp.ne.s32.totalorder %s27, %s30
      %p39 = scmp.eq.s32.totalorder %s22, 1
      %p40 = por %p38, %p39
      %p41 = scmp.ne.s32.totalorder %s30, %s31
      %p42 = scmp.eq.s32.totalorder %s22, 0
      %p43 = por %p41, %p42
      %p44 = scmp.ne.s32.totalorder %s30, %s31
      %p45 = scmp.eq.s32.totalorder %s23, 1
      %p46 = por %p44, %p45
      %p48 = scmp.ne.s32.totalorder %s31, %s47
      %p49 = scmp.eq.s32.totalorder %s23, 0
      %p50 = por %p48, %p49
      %s52 = sadd.s32 %s51, 1
      %p55 = scmp.eq.s32.totalorder %s17, 1
      %p56 = scmp.ne.s32.totalorder %s51, %s53
      %p57 = scmp.eq.s32.totalorder %s17, 0
      %p58 = por %p56, %p57
      %p59 = scmp.ne.s32.totalorder %s51, %s53
      %p60 = scmp.eq.s32.totalorder %s22, 1
      %p61 = por %p59, %p60
      %p62 = scmp.ne.s32.totalorder %s53, %s54
      %p63 = scmp.eq.s32.totalorder %s22, 0
      %p64 = por %p62, %p63
      %p65 = scmp.ne.s32.totalorder %s53, %s54
      %p66 = scmp.eq.s32.totalorder %s23, 1
      %p67 = por %p65, %p66
      %p69 = scmp.ne.s32.totalorder %s54, %s68
      %p70 = scmp.eq.s32.totalorder %s23, 0
      %p71 = por %p69, %p70
      %s73 = sadd.s32 %s72, 1
      %p76 = scmp.eq.s32.totalorder %s17, 1
      %p77 = scmp.ne.s32.totalorder %s72, %s74
      %p78 = scmp.eq.s32.totalorder %s17, 0
      %p79 = por %p77, %p78
      %p80 = scmp.ne.s32.totalorder %s72, %s74
      %p81 = scmp.eq.s32.totalorder %s22, 1
      %p82 = por %p80, %p81
      %p83 = scmp.ne.s32.totalorder %s74, %s75
      %p84 = scmp.eq.s32.totalorder %s22, 0
      %p85 = por %p83, %p84
      %p86 = scmp.ne.s32.totalorder %s74, %s75
      %p87 = scmp.eq.s32.totalorder %s23, 1
      %p88 = por %p86, %p87
      %p90 = scmp.ne.s32.totalorder %s75, %s89
      %p91 = scmp.eq.s32.totalorder %s23, 0
      %p92 = por %p90, %p91
      %s94 = sadd.s32 %s93, 1
      %p97 = scmp.eq.s32.totalorder %s17, 1
      %p98 = scmp.ne.s32.totalorder %s93, %s95
      %p99 = scmp.eq.s32.totalorder %s17, 0
      %p100 = por %p98, %p99
      %p101 = scmp.ne.s32.totalorder %s93, %s95
      %p102 = scmp.eq.s32.totalorder %s22, 1
      %p103 = por %p101, %p102
      %p104 = scmp.ne.s32.totalorder %s95, %s96
      %p105 = scmp.eq.s32.totalorder %s22, 0
      %p106 = por %p104, %p105
      %p107 = scmp.ne.s32.totalorder %s95, %s96
      %p108 = scmp.eq.s32.totalorder %s23, 1
      %p109 = por %p107, %p108
      %p111 = scmp.ne.s32.totalorder %s96, %s110
      %p112 = scmp.eq.s32.totalorder %s23, 0
      %p113 = por %p111, %p112
      %s114 = ssub.s32 %s17, %s24
      %p115 = scmp.eq.s32.totalorder %s114, 0
      %s117 = sadd.s32 %s116, 1
      %s118 = scalar_select %p115, %s116, %s117
      %p121 = pneg %p115
      %p122 = scmp.eq.s32.totalorder %s17, 1
      %p123 = por %p121, %p122
      %p124 = scmp.ne.s32.totalorder %s116, %s119
      %p125 = scmp.eq.s32.totalorder %s17, 0
      %p126 = por %p124, %p125
      %p127 = scmp.ne.s32.totalorder %s116, %s119
      %p128 = scmp.eq.s32.totalorder %s22, 1
      %p129 = por %p127, %p128
      %p130 = scmp.ne.s32.totalorder %s119, %s120
      %p131 = scmp.eq.s32.totalorder %s22, 0
      %p132 = por %p130, %p131
      %p133 = scmp.ne.s32.totalorder %s119, %s120
      %p134 = scmp.eq.s32.totalorder %s23, 1
      %p135 = por %p133, %p134
      %p137 = scmp.ne.s32.totalorder %s120, %s136
      %p138 = scmp.eq.s32.totalorder %s23, 0
      %p139 = por %p137, %p138
      %p140 = scmp.le.s32.totalorder 1, %s17
      %p141 = scmp.lt.s32.totalorder %s17, 3
      %p142 = pnand %p140, %p141
      %p143 = pneg %p142
      // Predicated region
      $region9: #{tpu_custom_call.1} parent=5 // pred_check
        _
      $region10: #{tpu_custom_call.1} parent=5 // pred_check_branch
        %145 = sbr.rel (%p142) target = $region12
      $region11: #{tpu_custom_call.1} parent=5 // pred_region
        %s146 = ssub.s32 %s17, 1
        // Predicated region
        $region13: #{tpu_custom_call.1} parent=11 // pred_check
          %p147 = pneg %p64
        $region14: #{tpu_custom_call.1} parent=11 // pred_check_branch
          %149 = sbr.rel (%p147) target = $region16
        $region15: #{tpu_custom_call.1} parent=11 // pred_region
          %s151 = ssub.s32 512, 512
          %152 = vsyncadd [#allocation6], %s151
          %s153 = sshll.u32 [#allocation5], 4
          %s154 = int_to_ptr.vmem [resolvable:$true] %s153
          %159 = dma.hbm_to_vmem [thread:$0]  %s1, 512, %s154, [#allocation6], 128, 128, 8
        $region16: #{tpu_custom_call.1} parent=11 // pred_fallthru
          _
        // Predicated region
        $region17: #{tpu_custom_call.1} parent=11 // pred_check
          %p160 = pneg %p85
        $region18: #{tpu_custom_call.1} parent=11 // pred_check_branch
          %162 = sbr.rel (%p160) target = $region20
        $region19: #{tpu_custom_call.1} parent=11 // pred_region
          %s164 = ssub.s32 128, 128
          %165 = vsyncadd [#allocation6], %s164
          %s167 = sshll.u32 [#allocation7], 4
          %s168 = int_to_ptr.vmem [resolvable:$true] %s167
          %170 = dma.hbm_to_vmem [thread:$0]  %s2, 128, %s168, [#allocation6]
        $region20: #{tpu_custom_call.1} parent=11 // pred_fallthru
          _
        // Predicated region
        $region21: #{tpu_custom_call.1} parent=11 // pred_check
          %p171 = pneg %p106
        $region22: #{tpu_custom_call.1} parent=11 // pred_check_branch
          %173 = sbr.rel (%p171) target = $region24
        $region23: #{tpu_custom_call.1} parent=11 // pred_region
          _
        $region24: #{tpu_custom_call.1} parent=11 // pred_fallthru
          _
      $region12: #{tpu_custom_call.1} parent=5 // pred_fallthru
        _
      %p174 = scmp.lt.s32.totalorder %s17, 2
      // Predicated region
      $region25: #{tpu_custom_call.1} parent=5 // pred_check
        %p175 = pneg %p174
      $region26: #{tpu_custom_call.1} parent=5 // pred_check_branch
        %177 = sbr.rel (%p175) target = $region28
      $region27: #{tpu_custom_call.1} parent=5 // pred_region
        // Predicated region
        $region29: #{tpu_custom_call.1} parent=27 // pred_check
          %p178 = pneg %p37
        $region30: #{tpu_custom_call.1} parent=27 // pred_check_branch
          %180 = sbr.rel (%p178) target = $region32
        $region31: #{tpu_custom_call.1} parent=27 // pred_region
          %s181 = sand.u32 %s27, 1
          %s182 = scalar_lea.sflag [#allocation3], %s181
          %s183 = sand.u32 %s27, 1
          %s184 = smul.addr %s183, 8
          %s185 = scalar_lea.vmem [#allocation2], %s184
          %s187 = ssub.s32 128, 128
          %188 = vsyncadd %s182, %s187
          %s189 = smul.addr %s17, 128
          %s190 = scalar_lea.hbm %s0, %s189
          %s192 = sshll.u32 %s185, 4
          %s193 = int_to_ptr.vmem [resolvable:$true] %s192
          %195 = dma.hbm_to_vmem [thread:$0]  %s190, 128, %s193, %s182
        $region32: #{tpu_custom_call.1} parent=27 // pred_fallthru
          _
      $region28: #{tpu_custom_call.1} parent=5 // pred_fallthru
        _
      %p196 = scmp.le.s32.totalorder 1, %s17
      %p197 = scmp.lt.s32.totalorder %s17, 3
      %p198 = pnand %p196, %p197
      %p199 = pneg %p198
      // Predicated region
      $region33: #{tpu_custom_call.1} parent=5 // pred_check
        _
      $region34: #{tpu_custom_call.1} parent=5 // pred_check_branch
        %201 = sbr.rel (%p198) target = $region36
      $region35: #{tpu_custom_call.1} parent=5 // pred_region
        %s202 = ssub.s32 %s17, 1
        %s203 = sand.u32 %s30, 1
        %s204 = scalar_lea.sflag [#allocation3], %s203
        %s205 = sand.u32 %s30, 1
        %s206 = smul.addr %s205, 8
        %s207 = scalar_lea.vmem [#allocation2], %s206
        // Predicated region
        $region37: #{tpu_custom_call.1} parent=35 // pred_check
          %p208 = pneg %p43
        $region38: #{tpu_custom_call.1} parent=35 // pred_check_branch
          %210 = sbr.rel (%p208) target = $region40
        $region39: #{tpu_custom_call.1} parent=35 // pred_region
          %211 = dma.done %s204, 128
        $region40: #{tpu_custom_call.1} parent=35 // pred_fallthru
          _
        // Predicated region
        $region41: #{tpu_custom_call.1} parent=35 // pred_check
          %p212 = pneg %p64
        $region42: #{tpu_custom_call.1} parent=35 // pred_check_branch
          %214 = sbr.rel (%p212) target = $region44
        $region43: #{tpu_custom_call.1} parent=35 // pred_region
          %215 = dma.done [#allocation6], 512
        $region44: #{tpu_custom_call.1} parent=35 // pred_fallthru
          _
        // Predicated region
        $region45: #{tpu_custom_call.1} parent=35 // pred_check
          %p216 = pneg %p85
        $region46: #{tpu_custom_call.1} parent=35 // pred_check_branch
          %218 = sbr.rel (%p216) target = $region48
        $region47: #{tpu_custom_call.1} parent=35 // pred_region
          %219 = dma.done [#allocation6], 128
        $region48: #{tpu_custom_call.1} parent=35 // pred_fallthru
          _
        %s220 = sand.u32 %s30, 1
        %s221 = scalar_lea.sflag [#allocation3], %s220
        %s222 = sand.u32 %s30, 1
        %s223 = smul.addr %s222, 8
        %s224 = scalar_lea.vmem [#allocation2], %s223
        %p225 = pneg %p43
        %p226 = pneg %p40
        %p227 = pneg %p64
        %p228 = pneg %p61
        %p229 = pneg %p85
        %p230 = pneg %p82
        %p231 = pneg %p106
        %p232 = pneg %p103
        %p233 = pneg %p132
        %p234 = pneg %p129
        %s235 = sand.u32 %s119, 1
        %s236 = scalar_lea.sflag [#allocation4], %s235
        %s237 = sand.u32 %s119, 1
        %s238 = scalar_lea.vmem [#allocation8], %s237
        %v240 = vld [vmem:[%s207] sm:$0xff]
        %v241 = vpack.c.bf16 %v240, %v240
        %v242 = vld [vmem:[#allocation5] sm:$0xff]
        %v243 = vld [vmem:[#allocation5 + $0x8] sm:$0xff]
        %v244 = vld [vmem:[#allocation5 + $0x10] sm:$0xff]
        %v245 = vld [vmem:[#allocation5 + $0x18] sm:$0xff]
        %v250 = vunpack.c.l.b16 %v242
        %v251 = vunpack.c.h.b16 %v242
        %v252 = vunpack.c.l.b16 %v243
        %v253 = vunpack.c.h.b16 %v243
        %v254 = vunpack.c.l.b16 %v244
        %v255 = vunpack.c.h.b16 %v244
        %v256 = vunpack.c.l.b16 %v245
        %v257 = vunpack.c.h.b16 %v245
        %v258 = vpack.c.b16 %v252, %v250
        %v259 = vpack.c.b16 %v253, %v251
        %v260 = vpack.c.b16 %v256, %v254
        %v261 = vpack.c.b16 %v257, %v255
        %vm266 = vcmask 261120
        %v268 = vsel %vm266, %v241, 0
        %270 = vmatprep.subr.bf16.mxu0 %v259
        %271 = vmatpush1.bf16.msra.mxu0 %v258
        %272 = vmatprep.subr.bf16.mxu0 %v261
        %273 = vmatpush1.bf16.msra.mxu0 %v260
        %274 = vmatprep.subr.bf16.mxu0 0
        %275 = vmatpush1.bf16.msra.mxu0 0
        %276 = vmatprep.subr.bf16.mxu0 0
        %277 = vmatpush1.bf16.msra.mxu0 0
        %278 = vmatprep.subr.bf16.mxu0 0
        %279 = vmatpush1.bf16.msra.mxu0 0
        %280 = vmatprep.subr.bf16.mxu0 0
        %281 = vmatpush1.bf16.msra.mxu0 0
        %282 = vmatprep.subr.bf16.mxu0 0
        %283 = vmatpush1.bf16.msra.mxu0 0
        %284 = vmatprep.subr.bf16.mxu0 0
        %285 = vmatpush1.bf16.msra.mxu0 0
        %286 = vmatprep.subr.bf16.mxu0 0
        %287 = vmatpush1.bf16.msra.mxu0 0
        %288 = vmatprep.subr.bf16.mxu0 0
        %289 = vmatpush1.bf16.msra.mxu0 0
        %290 = vmatprep.subr.bf16.mxu0 0
        %291 = vmatpush1.bf16.msra.mxu0 0
        %292 = vmatprep.subr.bf16.mxu0 0
        %293 = vmatpush1.bf16.msra.mxu0 0
        %294 = vmatprep.subr.bf16.mxu0 0
        %295 = vmatpush1.bf16.msra.mxu0 0
        %296 = vmatprep.subr.bf16.mxu0 0
        %297 = vmatpush1.bf16.msra.mxu0 0
        %298 = vmatprep.subr.bf16.mxu0 0
        %299 = vmatpush1.bf16.msra.mxu0 0
        %300 = vmatprep.subr.bf16.mxu0 0
        %301 = vmatpush1.bf16.msra.mxu0 0
        %302 = vmatprep.mubr.bf16.mxu0 0
        %303 = vmatmul.mubr.bf16.gmra.mrb[0].mxu0 %v268
        %v304 = vpop.f32.mrb[0].mxu0
        %v305 = vadd.f32 0.0, %v304
        %v306 = vpop.f32.mrb[0].mxu0
        %v307 = vadd.f32 0.0, %v306
        %v308 = vpop.f32.mrb[0].mxu0
        %v309 = vpop.f32.mrb[0].mxu0
        %310 = vdwg.mxu0
        %312 = vrot.lane.b32.xlu0 %v307, 112
        %v313 = vpop.permute.xlu0 %312
        %vm314 = vcmask 130048
        %v315 = vsel %vm314, %v307, 0
        %v317 = vsel %vm314, %v313, 0
        %319 = vmatprep.subr.mxu0 0.0
        %320 = vmatpush1.xpose.msra.mxu0 %v317
        %321 = vmatprep.subr.mxu0 0.0
        %322 = vmatpush1.xpose.msra.mxu0 0.0
        %323 = vmatprep.subr.mxu0 0.0
        %324 = vmatpush1.xpose.msra.mxu0 0.0
        %325 = vmatprep.subr.mxu0 0.0
        %326 = vmatpush1.xpose.msra.mxu0 0.0
        %327 = vmatprep.subr.mxu0 0.0
        %328 = vmatpush1.xpose.msra.mxu0 0.0
        %329 = vmatprep.subr.mxu0 0.0
        %330 = vmatpush1.xpose.msra.mxu0 0.0
        %331 = vmatprep.subr.mxu0 0.0
        %332 = vmatpush1.xpose.msra.mxu0 0.0
        %333 = vmatprep.subr.mxu0 0.0
        %334 = vmatpush1.xpose.msra.mxu0 0.0
        %335 = vmatprep.subr.mxu0 0.0
        %336 = vmatpush1.xpose.msra.mxu0 0.0
        %337 = vmatprep.subr.mxu0 0.0
        %338 = vmatpush1.xpose.msra.mxu0 0.0
        %339 = vmatprep.subr.mxu0 0.0
        %340 = vmatpush1.xpose.msra.mxu0 0.0
        %341 = vmatprep.subr.mxu0 0.0
        %342 = vmatpush1.xpose.msra.mxu0 0.0
        %343 = vmatprep.subr.mxu0 0.0
        %344 = vmatpush1.xpose.msra.mxu0 0.0
        %345 = vmatprep.subr.mxu0 0.0
        %346 = vmatpush1.xpose.msra.mxu0 0.0
        %347 = vmatprep.subr.mxu0 0.0
        %348 = vmatpush1.xpose.msra.mxu0 0.0
        %349 = vmatprep.subr.mxu0 0.0
        %350 = vmatpush1.xpose.msra.mxu0 0.0
        %351 = vmatprep.subr.mxu0 0.0
        %352 = vmatpush1.xpose.msra.mxu0 0.0
        %353 = vmatprep.subr.mxu0 0.0
        %354 = vmatpush1.xpose.msra.mxu0 0.0
        %355 = vmatprep.subr.mxu0 0.0
        %356 = vmatpush1.xpose.msra.mxu0 0.0
        %357 = vmatprep.subr.mxu0 0.0
        %358 = vmatpush1.xpose.msra.mxu0 0.0
        %359 = vmatprep.subr.mxu0 0.0
        %360 = vmatpush1.xpose.msra.mxu0 0.0
        %361 = vmatprep.subr.mxu0 0.0
        %362 = vmatpush1.xpose.msra.mxu0 0.0
        %363 = vmatprep.subr.mxu0 0.0
        %364 = vmatpush1.xpose.msra.mxu0 0.0
        %365 = vmatprep.subr.mxu0 0.0
        %366 = vmatpush1.xpose.msra.mxu0 0.0
        %367 = vmatprep.subr.mxu0 0.0
        %368 = vmatpush1.xpose.msra.mxu0 0.0
        %369 = vmatprep.subr.mxu0 0.0
        %370 = vmatpush1.xpose.msra.mxu0 0.0
        %371 = vmatprep.subr.mxu0 0.0
        %372 = vmatpush1.xpose.msra.mxu0 0.0
        %373 = vmatprep.subr.mxu0 0.0
        %374 = vmatpush1.xpose.msra.mxu0 0.0
        %375 = vmatprep.subr.mxu0 0.0
        %376 = vmatpush1.xpose.msra.mxu0 0.0
        %377 = vmatprep.subr.mxu0 0.0
        %378 = vmatpush1.xpose.msra.mxu0 0.0
        %379 = vmatprep.subr.mxu0 0.0
        %380 = vmatpush1.xpose.msra.mxu0 0.0
        %381 = vmatprep.subr.mxu0 0.0
        %382 = vmatpush1.xpose.msra.mxu0 0.0
        %383 = vmatprep.mubr.f32.mxu0 0.0
        %384 = vmatmul.mubr.f32.gmra.mrb[0].mxu0 %v315
        %v385 = vpop.f32.mrb[0].mxu0
        %v386 = vadd.f32 0.0, %v385
        %v387 = vpop.f32.mrb[0].mxu0
        %388 = vdwg.mxu0
        %v389 = vmul.f32 %v386, 0.25
        %v390 = vld [vmem:[#allocation7] sm:$0xff]
        %v391 = vadd.f32 %v389, %v390
        %vm392 = vcmask 64512
        %v393 = vsel %vm392, %v391, -inf
        %394 = vmax.xlane.f32.xlu0 %v393
        %v395 = vpop.xlane.xlu0 %394
        %v396 = vsub.f32 %v391, %v395
        %v397 = vmul.f32 %v396, 1.442695
        %v398 = vpow.pop %v397
        %v399 = vsel %vm392, %v398, 0.0
        %400 = vadd.xlane.f32.xlu0 %v399
        %v401 = vpop.xlane.xlu0 %400
        %v402 = vrcp.pop %v401
        %v403 = vmul.f32 %v398, %v402
        %v404 = vpack.c.bf16 %v403, %v403
        %v405 = vpack.c.bf16 %v305, %v305
        %v407 = vsel %vm392, %v404, 0
        %vm409 = vcmask 1043456
        %v411 = vsel %vm409, %v405, 0
        %413 = vmatprep.subr.bf16.mxu0 0
        %414 = vmatpush1.bf16.msra.mxu0 %v411
        %415 = vmatprep.subr.bf16.mxu0 0
        %416 = vmatpush1.bf16.msra.mxu0 0
        %417 = vmatprep.subr.bf16.mxu0 0
        %418 = vmatpush1.bf16.msra.mxu0 0
        %419 = vmatprep.subr.bf16.mxu0 0
        %420 = vmatpush1.bf16.msra.mxu0 0
        %421 = vmatprep.subr.bf16.mxu0 0
        %422 = vmatpush1.bf16.msra.mxu0 0
        %423 = vmatprep.subr.bf16.mxu0 0
        %424 = vmatpush1.bf16.msra.mxu0 0
        %425 = vmatprep.subr.bf16.mxu0 0
        %426 = vmatpush1.bf16.msra.mxu0 0
        %427 = vmatprep.subr.bf16.mxu0 0
        %428 = vmatpush1.bf16.msra.mxu0 0
        %429 = vmatprep.subr.bf16.mxu0 0
        %430 = vmatpush1.bf16.msra.mxu0 0
        %431 = vmatprep.subr.bf16.mxu0 0
        %432 = vmatpush1.bf16.msra.mxu0 0
        %433 = vmatprep.subr.bf16.mxu0 0
        %434 = vmatpush1.bf16.msra.mxu0 0
        %435 = vmatprep.subr.bf16.mxu0 0
        %436 = vmatpush1.bf16.msra.mxu0 0
        %437 = vmatprep.subr.bf16.mxu0 0
        %438 = vmatpush1.bf16.msra.mxu0 0
        %439 = vmatprep.subr.bf16.mxu0 0
        %440 = vmatpush1.bf16.msra.mxu0 0
        %441 = vmatprep.subr.bf16.mxu0 0
        %442 = vmatpush1.bf16.msra.mxu0 0
        %443 = vmatprep.subr.bf16.mxu0 0
        %444 = vmatpush1.bf16.msra.mxu0 0
        %445 = vmatprep.mubr.bf16.mxu0 0
        %446 = vmatmul.mubr.bf16.gmra.mrb[0].mxu0 %v407
        %v447 = vpop.f32.mrb[0].mxu0
        %v448 = vadd.f32 0.0, %v447
        %v449 = vpop.f32.mrb[0].mxu0
        %v450 = vpop.f32.mrb[0].mxu0
        %v451 = vpop.f32.mrb[0].mxu0
        %452 = vdwg.mxu0
        %v453 = vld [vmem:[%s3] sm:$0xff]
        %v454 = vmul.f32 %v448, %v453
        %v455 = vrot.slane %v454, 4
        %v456 = vadd.f32 %v454, %v455
        %v457 = vrot.slane %v456, 2
        %v458 = vadd.f32 %v456, %v457
        %v459 = vrot.slane %v458, 1
        %v460 = vadd.f32 %v458, %v459
        %461 = vst [vmem:[%s238] sm:$0x1] %v460
        %s462 = sand.u32 %s119, 1
        %s463 = scalar_lea.sflag [#allocation4], %s462
        %s464 = sand.u32 %s119, 1
        %s465 = scalar_lea.vmem [#allocation8], %s464
        // Predicated region
        $region49: #{tpu_custom_call.1} parent=35 // pred_check
          %p466 = pneg %p129
        $region50: #{tpu_custom_call.1} parent=35 // pred_check_branch
          %468 = sbr.rel (%p466) target = $region52
        $region51: #{tpu_custom_call.1} parent=35 // pred_region
          %s470 = ssub.s32 16, 16
          %471 = vsyncadd %s463, %s470
          %s472 = smul.addr %s22, 16
          %s473 = scalar_lea.hbm %s4, %s472
          %s475 = sshll.u32 %s465, 4
          %s476 = int_to_ptr.vmem [resolvable:$true] %s475
          %478 = dma.vmem_to_hbm [thread:$0]  %s476, 16, %s473, %s463
        $region52: #{tpu_custom_call.1} parent=35 // pred_fallthru
          _
      $region36: #{tpu_custom_call.1} parent=5 // pred_fallthru
        _
      %p479 = scmp.le.s32.totalorder 2, %s17
      // Predicated region
      $region53: #{tpu_custom_call.1} parent=5 // pred_check
        %p480 = pneg %p479
      $region54: #{tpu_custom_call.1} parent=5 // pred_check_branch
        %482 = sbr.rel (%p480) target = $region56
      $region55: #{tpu_custom_call.1} parent=5 // pred_region
        %s483 = ssub.s32 %s17, 2
        // Predicated region
        $region57: #{tpu_custom_call.1} parent=55 // pred_check
          %p484 = pneg %p135
        $region58: #{tpu_custom_call.1} parent=55 // pred_check_branch
          %486 = sbr.rel (%p484) target = $region60
        $region59: #{tpu_custom_call.1} parent=55 // pred_region
          %s487 = sand.u32 %s120, 1
          %s488 = scalar_lea.sflag [#allocation4], %s487
          %s489 = sand.u32 %s120, 1
          %s490 = scalar_lea.vmem [#allocation8], %s489
          %491 = dma.done %s488, 16
        $region60: #{tpu_custom_call.1} parent=55 // pred_fallthru
          _
      $region56: #{tpu_custom_call.1} parent=5 // pred_fallthru
        _
    $region6: #{tpu_custom_call.1} parent=1 // loop_footer
      %s21 = sadd.s32 1, %s17
    $region7: #{tpu_custom_call.1} parent=1 // loop_footer_branch
      %16 = sbr.rel target = $region3
    $region8: #{tpu_custom_call.1} parent=1 // loop_exit
      _
    %492 = vsyncpa [#allocation3], 1
    %s493 = scalar_lea.sflag [#allocation3], 1
    %494 = vsyncpa %s493, 1
    %495 = vsyncpa [#allocation6], 1
    %496 = vsyncpa [#allocation4], 1
    %s497 = scalar_lea.sflag [#allocation4], 1
    %498 = vsyncpa %s497, 1

</llo_original>
